<compile_context>
chip_gen: v7x
topology: tpu7x:2x2x1
jax: 0.10.0
libtpu: 0.0.40
codegen_flags: <defaults>
</compile_context>

<pallas_src>
import jax
import jax.numpy as jnp
from jax.experimental import pallas as pl
from jax.experimental.pallas import tpu as pltpu


def _round_up(x, m):
    return ((x + m - 1) // m) * m


def value_network_kernel(state_ref, wb_ref, bb_ref, w1_ref, b1_ref,
                         w2t_ref, b2_ref, out_ref):
    # --- synthetic base: lstm_final = tanh(state @ Wb + bb) ----------------
    # bf16 MXU operands (cast in wrapper), f32 accumulation; tanh stays f32
    # (v5e has no bf16 EUP).
    lstm_final = jnp.tanh(
        jnp.dot(state_ref[...], wb_ref[...],
                preferred_element_type=jnp.float32)
        + bb_ref[...]
    )
    # --- value_fc1 + ReLU ---------------------------------------------------
    hidden = jnp.maximum(
        jnp.dot(lstm_final.astype(jnp.bfloat16), w1_ref[...],
                preferred_element_type=jnp.float32)
        + b1_ref[...],
        0.0,
    )
    # --- value_fc2 (128 -> 1): VPU multiply + cross-lane reduce --------------
    # MXU stays free; XLU does the lane reduction. b2 is a scalar from SMEM.
    value = jnp.sum(hidden * w2t_ref[...], axis=-1, keepdims=True) + b2_ref[0, 0]
    # Lane-dense store: [bm, 1] -> [1, 1, bm] (XLU relayout; that slot has slack).
    out_ref[...] = value.reshape(out_ref.shape).astype(out_ref.dtype)


def value_network_forward(state, params, *, block_m=512):
    """state: [B, D_in] float32; params: dict of f32 weights. Returns [B, 1] f32."""
    B, d_in = state.shape
    H = params["wb"].shape[1]

    # Pad feature dims to lane width (128). Zero padding is a semantic no-op:
    # padded D_in columns contribute nothing; padded H columns give tanh(0)=0
    # and meet zero rows of w1; padded batch rows are sliced off at the end.
    d_pad = _round_up(d_in, 128)
    h_pad = _round_up(H, 128)

    # bf16 state tile packs sublanes as (16,128) -> batch tile multiple of 16.
    bm = min(block_m, _round_up(B, 16))

    # Re-derive the tile budget so it fits v7x's 64 MiB VMEM with headroom:
    # double-buffered bf16 state tile + single-buffered bf16 weights + f32
    # biases + f32 intermediates + double-buffered output.
    def vmem_budget(bm_):
        state_b = 2 * bm_ * d_pad * 2                   # 2 bufs, bf16 state tile
        weight_b = (d_pad * h_pad + h_pad * 128) * 2    # single-buffered bf16
        bias_b = (h_pad + 128 + 128) * 4
        act_b = bm_ * h_pad * 4 + bm_ * 128 * 4         # f32 intermediates
        out_b = 2 * bm_ * 4
        return state_b + weight_b + bias_b + act_b + out_b

    VMEM_CAP = 48 * 1024 * 1024
    while bm > 16 and vmem_budget(bm) > VMEM_CAP:
        bm = _round_up(bm // 2, 16)

    b_pad = _round_up(B, bm)
    n_tiles = b_pad // bm

    # Pad + cast MXU operands to bf16 in the wrapper (not per grid step).
    state_p = jnp.pad(state, ((0, b_pad - B), (0, d_pad - d_in))).astype(jnp.bfloat16)
    wb = jnp.pad(params["wb"], ((0, d_pad - d_in), (0, h_pad - H))).astype(jnp.bfloat16)
    bb = jnp.pad(params["bb"], ((0, 0), (0, h_pad - H)))        # f32
    w1 = jnp.pad(params["w1"], ((0, h_pad - H), (0, 0))).astype(jnp.bfloat16)
    b1 = params["b1"]                                            # f32 [1, 128]
    w2t = params["w2"].T                                         # f32 [1, 128]
    b2 = params["b2"]                                            # f32 [1, 1] -> SMEM

    vmem_limit = int(min(64 * 1024 * 1024,
                         max(32 * 1024 * 1024, 2 * vmem_budget(bm))))

    def resident(shape):
        # Constant index_map -> VMEM-resident; single-buffered (no benefit
        # from double-buffering an invariant operand).
        return pl.BlockSpec(shape, lambda i: (0, 0), pipeline_mode=pl.Buffered(1))

    out = pl.pallas_call(
        value_network_kernel,
        out_shape=jax.ShapeDtypeStruct((n_tiles, 1, bm), jnp.float32),
        grid_spec=pltpu.PrefetchScalarGridSpec(
            num_scalar_prefetch=0,
            grid=(n_tiles,),
            in_specs=[
                # streamed operand: one bf16 batch tile per grid step
                pl.BlockSpec((bm, d_pad), lambda i: (i, 0)),
                # resident weights / biases
                resident((d_pad, h_pad)),
                resident((1, h_pad)),
                resident((h_pad, 128)),
                resident((1, 128)),
                resident((1, 128)),
                # scalar fc2 bias in SMEM (no padded VMEM tile for a scalar)
                pl.BlockSpec(memory_space=pltpu.MemorySpace.SMEM),
            ],
            # lane-dense output block: (1, 1, bm)
            out_specs=pl.BlockSpec((1, 1, bm), lambda i: (i, 0, 0)),
        ),
        compiler_params=pltpu.CompilerParams(
            dimension_semantics=("parallel",),
            vmem_limit_bytes=vmem_limit,
        ),
    )(state_p, wb, bb, w1, b1, w2t, b2)

    # (n_tiles, 1, bm) -> flat batch order -> [B, 1]
    return out.reshape(-1)[:B][:, None]


def init_params(key, d_in, lstm_hidden):
    """Deterministic parameter init (shapes per ValueNetwork.__init__)."""
    ks = jax.random.split(key, 6)

    def uniform(k, shape, fan_in):
        bound = 1.0 / jnp.sqrt(jnp.float32(fan_in))
        return jax.random.uniform(k, shape, jnp.float32, -bound, bound)

    return {
        # synthetic base projection: D_in -> lstm_hidden
        "wb": uniform(ks[0], (d_in, lstm_hidden), d_in),
        "bb": uniform(ks[1], (1, lstm_hidden), d_in),
        # value_fc1: lstm_hidden -> 128
        "w1": uniform(ks[2], (lstm_hidden, 128), lstm_hidden),
        "b1": uniform(ks[3], (1, 128), lstm_hidden),
        # value_fc2: 128 -> 1
        "w2": uniform(ks[4], (128, 1), 128),
        "b2": uniform(ks[5], (1, 1), 128),
    }


if __name__ == "__main__":
    key = jax.random.PRNGKey(0)
    k_state, k_params = jax.random.split(key)

    B, D_IN, LSTM_HIDDEN = 2, 16, 32  # small shapes; lstm_hidden_size = 32

    state = jax.random.normal(k_state, (B, D_IN), jnp.float32)
    params = init_params(k_params, D_IN, LSTM_HIDDEN)

    value = value_network_forward(state, params)
    jax.block_until_ready(value)

    # reference check in plain JAX (full f32; kernel uses bf16 MXU operands
    # with f32 accumulation, so tolerance is relaxed accordingly)
    lstm_ref = jnp.tanh(state @ params["wb"] + params["bb"])
    hid_ref = jnp.maximum(lstm_ref @ params["w1"] + params["b1"], 0.0)
    val_ref = hid_ref @ params["w2"] + params["b2"]
    assert value.shape == (B, 1)
    assert jnp.allclose(value, val_ref, atol=2e-2, rtol=2e-2), (
        jnp.max(jnp.abs(value - val_ref)))

    print("KERNEL_OK")
</pallas_src>

<mosaic_0001>
module attributes {stable_mosaic.version = 11 : i64} {
  func.func @value_network_kernel(%arg0: i32, %arg1: memref<16x128xbf16, #tpu.memory_space<vmem>>, %arg2: memref<128x128xbf16, #tpu.memory_space<vmem>>, %arg3: memref<1x128xf32, #tpu.memory_space<vmem>>, %arg4: memref<128x128xbf16, #tpu.memory_space<vmem>>, %arg5: memref<1x128xf32, #tpu.memory_space<vmem>>, %arg6: memref<1x128xf32, #tpu.memory_space<vmem>>, %arg7: memref<1x1xf32, #tpu.memory_space<smem>>, %arg8: memref<1x1x16xf32, #tpu.memory_space<vmem>>) attributes {dimension_semantics = [#tpu.dimension_semantics<parallel>], iteration_bounds = array<i64: 1>, scalar_prefetch = 0 : i64, scratch_operands = 0 : i64, tpu.core_type = #tpu.core_type<tc>, window_params = [{transform_indices = @transform_0, window_bounds = array<i64: 16, 128>}, {pipeline_mode = #tpu.pipeline_mode<synchronous>, transform_indices = @transform_1, window_bounds = array<i64: 128, 128>}, {pipeline_mode = #tpu.pipeline_mode<synchronous>, transform_indices = @transform_2, window_bounds = array<i64: 1, 128>}, {pipeline_mode = #tpu.pipeline_mode<synchronous>, transform_indices = @transform_3, window_bounds = array<i64: 128, 128>}, {pipeline_mode = #tpu.pipeline_mode<synchronous>, transform_indices = @transform_4, window_bounds = array<i64: 1, 128>}, {pipeline_mode = #tpu.pipeline_mode<synchronous>, transform_indices = @transform_5, window_bounds = array<i64: 1, 128>}, {transform_indices = @transform_6, window_bounds = array<i64: 1, 1>}, {transform_indices = @transform_7, window_bounds = array<i64: 1, 1, 16>}]} {
    %c0 = arith.constant 0 : index
    %c0_0 = arith.constant 0 : index
    %0 = vector.load %arg1[%c0, %c0_0] : memref<16x128xbf16, #tpu.memory_space<vmem>>, vector<16x128xbf16>
    %c0_1 = arith.constant 0 : index
    %c0_2 = arith.constant 0 : index
    %1 = vector.load %arg2[%c0_1, %c0_2] : memref<128x128xbf16, #tpu.memory_space<vmem>>, vector<128x128xbf16>
    %cst = arith.constant dense<0.000000e+00> : vector<16x128xf32>
    %2 = tpu.matmul %0, %1, %cst {dimension_numbers = #tpu.dot_dimension_numbers<[1], [0], [0], [1], [0, 0, 1, 1], [], []>} : vector<16x128xbf16>, vector<128x128xbf16>, vector<16x128xf32> -> vector<16x128xf32>
    %c0_3 = arith.constant 0 : index
    %c0_4 = arith.constant 0 : index
    %3 = vector.load %arg3[%c0_3, %c0_4] : memref<1x128xf32, #tpu.memory_space<vmem>>, vector<1x128xf32>
    %4 = vector.broadcast %3 : vector<1x128xf32> to vector<16x128xf32>
    %5 = arith.addf %2, %4 : vector<16x128xf32>
    %6 = math.tanh %5 : vector<16x128xf32>
    %7 = arith.truncf %6 : vector<16x128xf32> to vector<16x128xbf16>
    %c0_5 = arith.constant 0 : index
    %c0_6 = arith.constant 0 : index
    %8 = vector.load %arg4[%c0_5, %c0_6] : memref<128x128xbf16, #tpu.memory_space<vmem>>, vector<128x128xbf16>
    %cst_7 = arith.constant dense<0.000000e+00> : vector<16x128xf32>
    %9 = tpu.matmul %7, %8, %cst_7 {dimension_numbers = #tpu.dot_dimension_numbers<[1], [0], [0], [1], [0, 0, 1, 1], [], []>} : vector<16x128xbf16>, vector<128x128xbf16>, vector<16x128xf32> -> vector<16x128xf32>
    %c0_8 = arith.constant 0 : index
    %c0_9 = arith.constant 0 : index
    %10 = vector.load %arg5[%c0_8, %c0_9] : memref<1x128xf32, #tpu.memory_space<vmem>>, vector<1x128xf32>
    %11 = vector.broadcast %10 : vector<1x128xf32> to vector<16x128xf32>
    %12 = arith.addf %9, %11 : vector<16x128xf32>
    %cst_10 = arith.constant 0.000000e+00 : f32
    %13 = vector.broadcast %cst_10 : f32 to vector<16x128xf32>
    %14 = arith.maximumf %12, %13 : vector<16x128xf32>
    %c0_11 = arith.constant 0 : index
    %c0_12 = arith.constant 0 : index
    %15 = vector.load %arg6[%c0_11, %c0_12] : memref<1x128xf32, #tpu.memory_space<vmem>>, vector<1x128xf32>
    %16 = vector.broadcast %15 : vector<1x128xf32> to vector<16x128xf32>
    %17 = arith.mulf %14, %16 : vector<16x128xf32>
    %cst_13 = arith.constant dense<0.000000e+00> : vector<16xf32>
    %18 = vector.multi_reduction <add>, %17, %cst_13 [1] : vector<16x128xf32> to vector<16xf32>
    %19 = vector.shape_cast %18 : vector<16xf32> to vector<16x1xf32>
    %c0_14 = arith.constant 0 : index
    %c0_15 = arith.constant 0 : index
    %20 = memref.load %arg7[%c0_14, %c0_15] : memref<1x1xf32, #tpu.memory_space<smem>>
    %21 = vector.broadcast %20 : f32 to vector<16x1xf32>
    %22 = arith.addf %19, %21 : vector<16x1xf32>
    %23 = vector.shape_cast %22 : vector<16x1xf32> to vector<1x1x16xf32>
    %c0_16 = arith.constant 0 : index
    %c0_17 = arith.constant 0 : index
    %c0_18 = arith.constant 0 : index
    %24 = vector.load %arg8[%c0_16, %c0_17, %c0_18] : memref<1x1x16xf32, #tpu.memory_space<vmem>>, vector<1x1x16xf32>
    tpu.vector_store %arg8[%c0_16, %c0_17, %c0_18], %23 {strides = array<i32>} : memref<1x1x16xf32, #tpu.memory_space<vmem>>, vector<1x1x16xf32>,
    return
  }
  func.func @transform_0(%arg0: i32) -> (i32, i32) {
    %c0_i32 = arith.constant 0 : i32
    %c0_i32_0 = arith.constant 0 : i32
    return %arg0, %c0_i32 : i32, i32
  }
  func.func @transform_1(%arg0: i32) -> (i32, i32) {
    %c0_i32 = arith.constant 0 : i32
    %c0_i32_0 = arith.constant 0 : i32
    %c0_i32_1 = arith.constant 0 : i32
    return %c0_i32, %c0_i32_0 : i32, i32
  }
  func.func @transform_2(%arg0: i32) -> (i32, i32) {
    %c0_i32 = arith.constant 0 : i32
    %c0_i32_0 = arith.constant 0 : i32
    %c0_i32_1 = arith.constant 0 : i32
    return %c0_i32, %c0_i32_0 : i32, i32
  }
  func.func @transform_3(%arg0: i32) -> (i32, i32) {
    %c0_i32 = arith.constant 0 : i32
    %c0_i32_0 = arith.constant 0 : i32
    %c0_i32_1 = arith.constant 0 : i32
    return %c0_i32, %c0_i32_0 : i32, i32
  }
  func.func @transform_4(%arg0: i32) -> (i32, i32) {
    %c0_i32 = arith.constant 0 : i32
    %c0_i32_0 = arith.constant 0 : i32
    %c0_i32_1 = arith.constant 0 : i32
    return %c0_i32, %c0_i32_0 : i32, i32
  }
  func.func @transform_5(%arg0: i32) -> (i32, i32) {
    %c0_i32 = arith.constant 0 : i32
    %c0_i32_0 = arith.constant 0 : i32
    %c0_i32_1 = arith.constant 0 : i32
    return %c0_i32, %c0_i32_0 : i32, i32
  }
  func.func @transform_6(%arg0: i32) -> (i32, i32) {
    %c0_i32 = arith.constant 0 : i32
    %c0_i32_0 = arith.constant 0 : i32
    %c0_i32_1 = arith.constant 0 : i32
    return %c0_i32, %c0_i32_0 : i32, i32
  }
  func.func @transform_7(%arg0: i32) -> (i32, i32, i32) {
    %c0_i32 = arith.constant 0 : i32
    %c0_i32_0 = arith.constant 0 : i32
    %c0_i32_1 = arith.constant 0 : i32
    return %arg0, %c0_i32, %c0_i32_0 : i32, i32, i32
  }
}

</mosaic_0001>

<llo_original>
// kernel: tpu_custom_call.1
$region0: #{tpu_custom_call.1}
  #allocation0 [shape = 'u32[]', space=smem, size = 0x4, offset = 0x4, fixed_abs, tag = 'smem constant byte address 0x4 - core index']
  #allocation1 [shape = 'u32[144,128]{1,0:T(1,128)}', space=vmem, size = 0x12000, scoped, tag = 'internal scratch']
  #allocation2 [shape = 'f32[1,1]{1,0:T(1,128)S(6)}', space=smem, size = 0x200, scoped, tag = 'scoped memory for tpu_custom_call.1']
  %s0 = inlined_call_operand.hbm [shape: bf16[16,128], index: 0, kind: input, shape index: {}]
  %s1 = inlined_call_operand.hbm [shape: bf16[128,128], index: 1, kind: input, shape index: {}]
  %s2 = inlined_call_operand.vmem [shape: f32[1,128], index: 2, kind: input, shape index: {}]
  %s3 = inlined_call_operand.hbm [shape: bf16[128,128], index: 3, kind: input, shape index: {}]
  %s4 = inlined_call_operand.vmem [shape: f32[1,128], index: 4, kind: input, shape index: {}]
  %s5 = inlined_call_operand.vmem [shape: f32[1,128], index: 5, kind: input, shape index: {}]
  %s6 = inlined_call_operand.<no memory space> [shape: f32[1,1], index: 6, kind: input, shape index: {}]
  %s7 = inlined_call_operand.hbm [shape: f32[1,1,16], index: 7, kind: output, shape index: {}]
  %s8 = sld [smem:[#allocation0]]
  $region50: #{tpu_custom_call.1} parent=0
    _
  %s10 = ssub.s32 1, %s8
  %s11 = scalar_select 0, %s10, %s8
  %12 = sst [smem:[#allocation2]] %s6
  $region1: #{tpu_custom_call.1} parent=0
    #allocation3 [shape = 'u8[4096]{0}', space=vmem, size = 0x1000, scoped, tag = 'input window, operand 0, single buffered']
    #allocation4 [shape = 's32[1]{0}', space=sflag, size = 0x4, scoped, tag = 'scoped memory for tpu_custom_call.1']
    #allocation5 [shape = 's32[1]{0}', space=sflag, size = 0x4, scoped, tag = 'scoped memory for tpu_custom_call.1']
    #allocation6 [shape = 'u8[32768]{0}', space=vmem, size = 0x8000, scoped, tag = 'input window, operand 1, single buffered']
    #allocation7 [shape = 's32[1]{0}', space=sflag, size = 0x4, scoped, tag = 'scoped memory for tpu_custom_call.1']
    #allocation8 [shape = 'u8[32768]{0}', space=vmem, size = 0x8000, scoped, tag = 'input window, operand 3, single buffered']
    #allocation9 [shape = 'u8[512]{0}', space=vmem, size = 0x400, scoped, tag = 'output window, operand 0, single buffered']
    %13 = vsyncpa [#allocation4], 0
    %14 = vsyncpa [#allocation7], 0
    %15 = vsyncpa [#allocation5], 0
    // Predicated region
    $region2: #{tpu_custom_call.1} parent=1 // pred_check
      _
    $region3: #{tpu_custom_call.1} parent=1 // pred_check_branch
      %17 = sbr.rel (0) target = $region5
    $region4: #{tpu_custom_call.1} parent=1 // pred_region
      %s19 = ssub.s32 128, 128
      %20 = vsyncadd [#allocation4], %s19
      %s21 = sshll.u32 [#allocation3], 4
      %s22 = int_to_ptr.vmem [resolvable:$true] %s21
      %27 = dma.hbm_to_vmem [thread:$0]  %s0, 128, %s22, [#allocation4], 64, 64, 4
    $region5: #{tpu_custom_call.1} parent=1 // pred_fallthru
      _
    // Predicated region
    $region6: #{tpu_custom_call.1} parent=1 // pred_check
      _
    $region7: #{tpu_custom_call.1} parent=1 // pred_check_branch
      %29 = sbr.rel (0) target = $region9
    $region8: #{tpu_custom_call.1} parent=1 // pred_region
      %s31 = ssub.s32 1024, 1024
      %32 = vsyncadd [#allocation7], %s31
      %s33 = sshll.u32 [#allocation6], 4
      %s34 = int_to_ptr.vmem [resolvable:$true] %s33
      %39 = dma.hbm_to_vmem [thread:$0]  %s1, 1024, %s34, [#allocation7], 64, 64, 4
    $region9: #{tpu_custom_call.1} parent=1 // pred_fallthru
      _
    // Predicated region
    $region10: #{tpu_custom_call.1} parent=1 // pred_check
      _
    $region11: #{tpu_custom_call.1} parent=1 // pred_check_branch
      %41 = sbr.rel (0) target = $region13
    $region12: #{tpu_custom_call.1} parent=1 // pred_region
      _
    $region13: #{tpu_custom_call.1} parent=1 // pred_fallthru
      _
    // Predicated region
    $region14: #{tpu_custom_call.1} parent=1 // pred_check
      _
    $region15: #{tpu_custom_call.1} parent=1 // pred_check_branch
      %43 = sbr.rel (0) target = $region17
    $region16: #{tpu_custom_call.1} parent=1 // pred_region
      %s45 = ssub.s32 1024, 1024
      %46 = vsyncadd [#allocation7], %s45
      %s47 = sshll.u32 [#allocation8], 4
      %s48 = int_to_ptr.vmem [resolvable:$true] %s47
      %53 = dma.hbm_to_vmem [thread:$0]  %s3, 1024, %s48, [#allocation7], 64, 64, 4
    $region17: #{tpu_custom_call.1} parent=1 // pred_fallthru
      _
    // Predicated region
    $region18: #{tpu_custom_call.1} parent=1 // pred_check
      _
    $region19: #{tpu_custom_call.1} parent=1 // pred_check_branch
      %55 = sbr.rel (0) target = $region21
    $region20: #{tpu_custom_call.1} parent=1 // pred_region
      _
    $region21: #{tpu_custom_call.1} parent=1 // pred_fallthru
      _
    // Predicated region
    $region22: #{tpu_custom_call.1} parent=1 // pred_check
      _
    $region23: #{tpu_custom_call.1} parent=1 // pred_check_branch
      %57 = sbr.rel (0) target = $region25
    $region24: #{tpu_custom_call.1} parent=1 // pred_region
      _
    $region25: #{tpu_custom_call.1} parent=1 // pred_fallthru
      _
    // Predicated region
    $region26: #{tpu_custom_call.1} parent=1 // pred_check
      _
    $region27: #{tpu_custom_call.1} parent=1 // pred_check_branch
      %59 = sbr.rel (0) target = $region29
    $region28: #{tpu_custom_call.1} parent=1 // pred_region
      _
    $region29: #{tpu_custom_call.1} parent=1 // pred_fallthru
      _
    // Predicated region
    $region30: #{tpu_custom_call.1} parent=1 // pred_check
      _
    $region31: #{tpu_custom_call.1} parent=1 // pred_check_branch
      %61 = sbr.rel (0) target = $region33
    $region32: #{tpu_custom_call.1} parent=1 // pred_region
      %62 = dma.done [#allocation4], 128
    $region33: #{tpu_custom_call.1} parent=1 // pred_fallthru
      _
    // Predicated region
    $region34: #{tpu_custom_call.1} parent=1 // pred_check
      _
    $region35: #{tpu_custom_call.1} parent=1 // pred_check_branch
      %64 = sbr.rel (0) target = $region37
    $region36: #{tpu_custom_call.1} parent=1 // pred_region
      %65 = dma.done [#allocation7], 1024
    $region37: #{tpu_custom_call.1} parent=1 // pred_fallthru
      _
    // Predicated region
    $region38: #{tpu_custom_call.1} parent=1 // pred_check
      _
    $region39: #{tpu_custom_call.1} parent=1 // pred_check_branch
      %67 = sbr.rel (0) target = $region41
    $region40: #{tpu_custom_call.1} parent=1 // pred_region
      %68 = dma.done [#allocation7], 1024
    $region41: #{tpu_custom_call.1} parent=1 // pred_fallthru
      _
    %v70 = vld [vmem:[#allocation3] sm:$0xf]
    %v71 = vld [vmem:[#allocation3 + $0x4] sm:$0xf]
    %v72 = vld [vmem:[#allocation6] sm:$0xf]
    %v73 = vld [vmem:[#allocation6 + $0x4] sm:$0xf]
    %v74 = vld [vmem:[#allocation6 + $0x8] sm:$0xf]
    %v75 = vld [vmem:[#allocation6 + $0xc] sm:$0xf]
    %v76 = vld [vmem:[#allocation6 + $0x10] sm:$0xf]
    %v77 = vld [vmem:[#allocation6 + $0x14] sm:$0xf]
    %v78 = vld [vmem:[#allocation6 + $0x18] sm:$0xf]
    %v79 = vld [vmem:[#allocation6 + $0x1c] sm:$0xf]
    %v80 = vld [vmem:[#allocation6 + $0x20] sm:$0xf]
    %v81 = vld [vmem:[#allocation6 + $0x24] sm:$0xf]
    %v82 = vld [vmem:[#allocation6 + $0x28] sm:$0xf]
    %v83 = vld [vmem:[#allocation6 + $0x2c] sm:$0xf]
    %v84 = vld [vmem:[#allocation6 + $0x30] sm:$0xf]
    %v85 = vld [vmem:[#allocation6 + $0x34] sm:$0xf]
    %v86 = vld [vmem:[#allocation6 + $0x38] sm:$0xf]
    %v87 = vld [vmem:[#allocation6 + $0x3c] sm:$0xf]
    %v88 = vld [vmem:[%s2] sm:$0x1]
    %v90 = vlaneseq
    %v91 = vshrl.u32 %v90, 7
    %v92 = vsub.s32 0, %v91
    %v93 = vrot.slane %v88, %v92
    %v97 = vunpack.c.l.b16 %v70
    %v98 = vunpack.c.l.b16 %v71
    %v99 = vpack.c.b16 %v98, %v97
    %v117 = vunpack.c.l.b16 %v72
    %v118 = vunpack.c.l.b16 %v73
    %v119 = vunpack.c.l.b16 %v74
    %v120 = vunpack.c.l.b16 %v75
    %v121 = vunpack.c.l.b16 %v76
    %v122 = vunpack.c.l.b16 %v77
    %v123 = vunpack.c.l.b16 %v78
    %v124 = vunpack.c.l.b16 %v79
    %v125 = vunpack.c.l.b16 %v80
    %v126 = vunpack.c.l.b16 %v81
    %v127 = vunpack.c.l.b16 %v82
    %v128 = vunpack.c.l.b16 %v83
    %v129 = vunpack.c.l.b16 %v84
    %v130 = vunpack.c.l.b16 %v85
    %v131 = vunpack.c.l.b16 %v86
    %v132 = vunpack.c.l.b16 %v87
    %v133 = vpack.c.b16 %v118, %v117
    %v134 = vpack.c.b16 %v120, %v119
    %v135 = vpack.c.b16 %v122, %v121
    %v136 = vpack.c.b16 %v124, %v123
    %v137 = vpack.c.b16 %v126, %v125
    %v138 = vpack.c.b16 %v128, %v127
    %v139 = vpack.c.b16 %v130, %v129
    %v140 = vpack.c.b16 %v132, %v131
    %149 = vmatprep.subr.bf16.mxu0 0
    %150 = vmatpush1.bf16.msra.mxu0 %v133
    %151 = vmatprep.subr.bf16.mxu0 0
    %152 = vmatpush1.bf16.msra.mxu0 %v134
    %153 = vmatprep.subr.bf16.mxu0 0
    %154 = vmatpush1.bf16.msra.mxu0 %v135
    %155 = vmatprep.subr.bf16.mxu0 0
    %156 = vmatpush1.bf16.msra.mxu0 %v136
    %157 = vmatprep.subr.bf16.mxu0 0
    %158 = vmatpush1.bf16.msra.mxu0 %v137
    %159 = vmatprep.subr.bf16.mxu0 0
    %160 = vmatpush1.bf16.msra.mxu0 %v138
    %161 = vmatprep.subr.bf16.mxu0 0
    %162 = vmatpush1.bf16.msra.mxu0 %v139
    %163 = vmatprep.subr.bf16.mxu0 0
    %164 = vmatpush1.bf16.msra.mxu0 %v140
    %165 = vmatprep.subr.bf16.mxu0 0
    %166 = vmatpush1.bf16.msra.mxu0 0
    %167 = vmatprep.subr.bf16.mxu0 0
    %168 = vmatpush1.bf16.msra.mxu0 0
    %169 = vmatprep.subr.bf16.mxu0 0
    %170 = vmatpush1.bf16.msra.mxu0 0
    %171 = vmatprep.subr.bf16.mxu0 0
    %172 = vmatpush1.bf16.msra.mxu0 0
    %173 = vmatprep.subr.bf16.mxu0 0
    %174 = vmatpush1.bf16.msra.mxu0 0
    %175 = vmatprep.subr.bf16.mxu0 0
    %176 = vmatpush1.bf16.msra.mxu0 0
    %177 = vmatprep.subr.bf16.mxu0 0
    %178 = vmatpush1.bf16.msra.mxu0 0
    %179 = vmatprep.subr.bf16.mxu0 0
    %180 = vmatpush1.bf16.msra.mxu0 0
    %181 = vmatprep.mubr.bf16.mxu0 0
    %182 = vmatmul.mubr.bf16.gmra.mrb[0].mxu0 %v99
    %v183 = vpop.f32.mrb[0].mxu0
    %v184 = vadd.f32 %v93, %v183
    %v185 = vpop.f32.mrb[0].mxu0
    %v186 = vpop.f32.mrb[0].mxu0
    %v187 = vadd.f32 %v93, %v186
    %v188 = vpop.f32.mrb[0].mxu0
    %189 = vdwg.mxu0
    %v190 = vtanh.pop %v184
    %v191 = vtanh.pop %v187
    %v192 = vpack.c.bf16 %v191, %v190
    %v193 = vld [vmem:[#allocation8] sm:$0xf]
    %v194 = vld [vmem:[#allocation8 + $0x4] sm:$0xf]
    %v195 = vld [vmem:[#allocation8 + $0x8] sm:$0xf]
    %v196 = vld [vmem:[#allocation8 + $0xc] sm:$0xf]
    %v197 = vld [vmem:[#allocation8 + $0x10] sm:$0xf]
    %v198 = vld [vmem:[#allocation8 + $0x14] sm:$0xf]
    %v199 = vld [vmem:[#allocation8 + $0x18] sm:$0xf]
    %v200 = vld [vmem:[#allocation8 + $0x1c] sm:$0xf]
    %v201 = vld [vmem:[#allocation8 + $0x20] sm:$0xf]
    %v202 = vld [vmem:[#allocation8 + $0x24] sm:$0xf]
    %v203 = vld [vmem:[#allocation8 + $0x28] sm:$0xf]
    %v204 = vld [vmem:[#allocation8 + $0x2c] sm:$0xf]
    %v205 = vld [vmem:[#allocation8 + $0x30] sm:$0xf]
    %v206 = vld [vmem:[#allocation8 + $0x34] sm:$0xf]
    %v207 = vld [vmem:[#allocation8 + $0x38] sm:$0xf]
    %v208 = vld [vmem:[#allocation8 + $0x3c] sm:$0xf]
    %v209 = vld [vmem:[%s4] sm:$0x1]
    %v211 = vlaneseq
    %v212 = vshrl.u32 %v211, 7
    %v213 = vsub.s32 0, %v212
    %v214 = vrot.slane %v209, %v213
    %v232 = vunpack.c.l.b16 %v193
    %v233 = vunpack.c.l.b16 %v194
    %v234 = vunpack.c.l.b16 %v195
    %v235 = vunpack.c.l.b16 %v196
    %v236 = vunpack.c.l.b16 %v197
    %v237 = vunpack.c.l.b16 %v198
    %v238 = vunpack.c.l.b16 %v199
    %v239 = vunpack.c.l.b16 %v200
    %v240 = vunpack.c.l.b16 %v201
    %v241 = vunpack.c.l.b16 %v202
    %v242 = vunpack.c.l.b16 %v203
    %v243 = vunpack.c.l.b16 %v204
    %v244 = vunpack.c.l.b16 %v205
    %v245 = vunpack.c.l.b16 %v206
    %v246 = vunpack.c.l.b16 %v207
    %v247 = vunpack.c.l.b16 %v208
    %v248 = vpack.c.b16 %v233, %v232
    %v249 = vpack.c.b16 %v235, %v234
    %v250 = vpack.c.b16 %v237, %v236
    %v251 = vpack.c.b16 %v239, %v238
    %v252 = vpack.c.b16 %v241, %v240
    %v253 = vpack.c.b16 %v243, %v242
    %v254 = vpack.c.b16 %v245, %v244
    %v255 = vpack.c.b16 %v247, %v246
    %264 = vmatprep.subr.bf16.mxu0 0
    %265 = vmatpush1.bf16.msra.mxu0 %v248
    %266 = vmatprep.subr.bf16.mxu0 0
    %267 = vmatpush1.bf16.msra.mxu0 %v249
    %268 = vmatprep.subr.bf16.mxu0 0
    %269 = vmatpush1.bf16.msra.mxu0 %v250
    %270 = vmatprep.subr.bf16.mxu0 0
    %271 = vmatpush1.bf16.msra.mxu0 %v251
    %272 = vmatprep.subr.bf16.mxu0 0
    %273 = vmatpush1.bf16.msra.mxu0 %v252
    %274 = vmatprep.subr.bf16.mxu0 0
    %275 = vmatpush1.bf16.msra.mxu0 %v253
    %276 = vmatprep.subr.bf16.mxu0 0
    %277 = vmatpush1.bf16.msra.mxu0 %v254
    %278 = vmatprep.subr.bf16.mxu0 0
    %279 = vmatpush1.bf16.msra.mxu0 %v255
    %280 = vmatprep.subr.bf16.mxu0 0
    %281 = vmatpush1.bf16.msra.mxu0 0
    %282 = vmatprep.subr.bf16.mxu0 0
    %283 = vmatpush1.bf16.msra.mxu0 0
    %284 = vmatprep.subr.bf16.mxu0 0
    %285 = vmatpush1.bf16.msra.mxu0 0
    %286 = vmatprep.subr.bf16.mxu0 0
    %287 = vmatpush1.bf16.msra.mxu0 0
    %288 = vmatprep.subr.bf16.mxu0 0
    %289 = vmatpush1.bf16.msra.mxu0 0
    %290 = vmatprep.subr.bf16.mxu0 0
    %291 = vmatpush1.bf16.msra.mxu0 0
    %292 = vmatprep.subr.bf16.mxu0 0
    %293 = vmatpush1.bf16.msra.mxu0 0
    %294 = vmatprep.subr.bf16.mxu0 0
    %295 = vmatpush1.bf16.msra.mxu0 0
    %296 = vmatprep.mubr.bf16.mxu0 0
    %297 = vmatmul.mubr.bf16.gmra.mrb[0].mxu0 %v192
    %v298 = vpop.f32.mrb[0].mxu0
    %v299 = vadd.f32 %v214, %v298
    %v300 = vpop.f32.mrb[0].mxu0
    %v301 = vpop.f32.mrb[0].mxu0
    %v302 = vadd.f32 %v214, %v301
    %v303 = vpop.f32.mrb[0].mxu0
    %304 = vdwg.mxu0
    %v305 = vmax.f32 %v299, 0.0
    %v306 = vmax.f32 %v302, 0.0
    %v307 = vld [vmem:[%s5] sm:$0x1]
    %v309 = vlaneseq
    %v310 = vshrl.u32 %v309, 7
    %v311 = vsub.s32 0, %v310
    %v312 = vrot.slane %v307, %v311
    %v314 = vmul.f32 %v305, %v312
    %v315 = vmul.f32 %v306, %v312
    %316 = vadd.xlane.f32.xlu0 %v314
    %v317 = vpop.xlane.xlu0 %316
    %318 = vadd.xlane.f32.xlu0 %v315
    %v319 = vpop.xlane.xlu0 %318
    %s320 = sld [smem:[#allocation2]]
    %v321 = vstv %s320
    %v322 = vadd.f32 %v317, %v321
    %v323 = vadd.f32 %v319, %v321
    %v326 = vlaneseq
    %v327 = vand.u32 %v326, 127
    %v328 = vlaneseq
    %v329 = vshrl.u32 %v328, 7
    %v330 = vsub.s32 %v327, %v329
    %v331 = vrot.slane %v322, %v330
    %v332 = vadd.s32 %v327, 4294967288
    %v333 = vlaneseq
    %v334 = vshrl.u32 %v333, 7
    %v335 = vsub.s32 %v332, %v334
    %v336 = vrot.slane %v323, %v335
    %vm337 = vcmask 130112
    %v338 = vsel %vm337, %v336, %v331
    %vm340 = vcmask 122880
    %341 = vst.msk [vmem:[#allocation9] sm:$0x1] %vm340, %v338
    // Predicated region
    $region42: #{tpu_custom_call.1} parent=1 // pred_check
      _
    $region43: #{tpu_custom_call.1} parent=1 // pred_check_branch
      %343 = sbr.rel (0) target = $region45
    $region44: #{tpu_custom_call.1} parent=1 // pred_region
      %s345 = ssub.s32 16, 16
      %346 = vsyncadd [#allocation5], %s345
      %s348 = sshll.u32 [#allocation9], 4
      %s349 = int_to_ptr.vmem [resolvable:$true] %s348
      %351 = dma.vmem_to_hbm [thread:$0]  %s349, 16, %s7, [#allocation5]
    $region45: #{tpu_custom_call.1} parent=1 // pred_fallthru
      _
    // Predicated region
    $region46: #{tpu_custom_call.1} parent=1 // pred_check
      _
    $region47: #{tpu_custom_call.1} parent=1 // pred_check_branch
      %353 = sbr.rel (0) target = $region49
    $region48: #{tpu_custom_call.1} parent=1 // pred_region
      %354 = dma.done [#allocation5], 16
    $region49: #{tpu_custom_call.1} parent=1 // pred_fallthru
      _
    %355 = vsyncpa [#allocation4], 1
    %356 = vsyncpa [#allocation7], 1
    %357 = vsyncpa [#allocation5], 1

</llo_original>
